<compile_context>
chip_gen: v7x
topology: tpu7x:2x2x1
jax: 0.10.0
libtpu: 0.0.40
codegen_flags: <defaults>
</compile_context>

<pallas_src>
import functools

import jax
import jax.numpy as jnp
from jax.experimental import pallas as pl
from jax.experimental.pallas import tpu as pltpu

NEG_SLOPE = 0.2  # nn.LeakyReLU(0.2)


def _leaky(x):
    return jnp.where(x >= 0, x, NEG_SLOPE * x)


def _pick_tile(n: int) -> int:
    # Lane-dense output tile (multiple of 128) when the dim allows it,
    # otherwise the full dim (BlockSpec full-extent is always legal).
    for t in (512, 256, 128):
        if n % t == 0:
            return t
    return n


# ---------------------------------------------------------------------------
# Kernels
# ---------------------------------------------------------------------------
def _linear_kernel(x_ref, w_ref, b_ref, o_ref, *, apply_leaky):
    # x_ref: (B, K)  w_ref: (K, tn)  b_ref: (1, tn)  o_ref: (B, tn)
    y = jnp.dot(x_ref[...], w_ref[...], preferred_element_type=jnp.float32)
    y = y + b_ref[...]
    if apply_leaky:
        y = _leaky(y)
    o_ref[...] = y.astype(o_ref.dtype)


def _fused_final_kernel(a_ref, wa_ref, ba_ref, d_ref, wd_ref, bd_ref, o_ref, *,
                        leaky_attitude):
    # attitude final Linear (+ optional LeakyReLU), direction Linear, multiply.
    att = jnp.dot(a_ref[...], wa_ref[...], preferred_element_type=jnp.float32)
    att = att + ba_ref[...]
    if leaky_attitude:
        att = _leaky(att)
    dire = jnp.dot(d_ref[...], wd_ref[...], preferred_element_type=jnp.float32)
    dire = dire + bd_ref[...]
    o_ref[...] = (att * dire).astype(o_ref.dtype)


# ---------------------------------------------------------------------------
# Wrappers
# ---------------------------------------------------------------------------
def linear_pallas(x, w, b, *, apply_leaky):
    """y = leaky?(x @ w + b).  x: (B, K), w: (K, N), b: (N,)."""
    B, K = x.shape
    Kw, N = w.shape
    assert K == Kw
    tn = _pick_tile(N)
    kernel = functools.partial(_linear_kernel, apply_leaky=apply_leaky)
    return pl.pallas_call(
        kernel,
        out_shape=jax.ShapeDtypeStruct((B, N), x.dtype),
        grid=(N // tn,),
        in_specs=[
            pl.BlockSpec((B, K), lambda j: (0, 0)),
            pl.BlockSpec((K, tn), lambda j: (0, j)),
            pl.BlockSpec((1, tn), lambda j: (0, j)),
        ],
        out_specs=pl.BlockSpec((B, tn), lambda j: (0, j)),
        compiler_params=pltpu.CompilerParams(
            dimension_semantics=("parallel",)),
    )(x, w, b.reshape(1, N))


def regression_volume2_forward(bs_w, delta_w, params):
    """params:
      "attitude":  list of (W(K,N), b(N,)) layers; all but the last are
                   followed by LeakyReLU(0.2).
      "leaky_final": whether the final attitude Linear is followed by
                   LeakyReLU (True iff hidden_dims != []).
      "direction": (W(w_dim, volume_dim), b(volume_dim,)).
    """
    att_layers = params["attitude"]
    wd, bd = params["direction"]
    leaky_final = params["leaky_final"]

    # Hidden attitude layers (Linear + LeakyReLU).
    a = bs_w
    for (W, b) in att_layers[:-1]:
        a = linear_pallas(a, W, b, apply_leaky=True)

    # Fused final stage: attitude final Linear (+opt LeakyReLU), direction
    # Linear, and the elementwise multiply — single kernel, no HBM round-trip
    # of the two (B, volume_dim) intermediates.
    Wa, ba = att_layers[-1]
    B, Ka = a.shape
    Kd = delta_w.shape[1]
    N = Wa.shape[1]
    tn = _pick_tile(N)
    kernel = functools.partial(_fused_final_kernel, leaky_attitude=leaky_final)
    return pl.pallas_call(
        kernel,
        out_shape=jax.ShapeDtypeStruct((B, N), bs_w.dtype),
        grid=(N // tn,),
        in_specs=[
            pl.BlockSpec((B, Ka), lambda j: (0, 0)),
            pl.BlockSpec((Ka, tn), lambda j: (0, j)),
            pl.BlockSpec((1, tn), lambda j: (0, j)),
            pl.BlockSpec((B, Kd), lambda j: (0, 0)),
            pl.BlockSpec((Kd, tn), lambda j: (0, j)),
            pl.BlockSpec((1, tn), lambda j: (0, j)),
        ],
        out_specs=pl.BlockSpec((B, tn), lambda j: (0, j)),
        compiler_params=pltpu.CompilerParams(
            dimension_semantics=("parallel",)),
    )(a, Wa, ba.reshape(1, N), delta_w, wd, bd.reshape(1, N))


# ---------------------------------------------------------------------------
# Pure-JAX reference (mirrors the PyTorch forward exactly).
# ---------------------------------------------------------------------------
def reference_forward(bs_w, delta_w, params):
    a = bs_w
    att_layers = params["attitude"]
    for (W, b) in att_layers[:-1]:
        a = _leaky(a @ W + b)
    Wa, ba = att_layers[-1]
    a = a @ Wa + ba
    if params["leaky_final"]:
        a = _leaky(a)
    wd, bd = params["direction"]
    d = delta_w @ wd + bd
    return a * d


# ---------------------------------------------------------------------------
# Parameter construction (weights stored as (in, out), i.e. PyTorch W^T).
# ---------------------------------------------------------------------------
def make_params(key, w_dim, volume_dim, hidden_dims):
    keys = jax.random.split(key, 2 * (len(hidden_dims) + 2))
    ki = iter(keys)

    def lin(k_in, k_out):
        w = jax.random.normal(next(ki), (k_in, k_out), jnp.float32) * 0.1
        b = jax.random.normal(next(ki), (k_out,), jnp.float32) * 0.1
        return w, b

    attitude = []
    prev = w_dim
    for h in hidden_dims:
        attitude.append(lin(prev, h))
        prev = h
    attitude.append(lin(prev, volume_dim))
    direction = lin(w_dim, volume_dim)
    return {
        "attitude": attitude,
        "direction": direction,
        "leaky_final": len(hidden_dims) > 0,  # matches the PyTorch constructor
    }


if __name__ == "__main__":
    key = jax.random.PRNGKey(0)
    batch, w_dim, volume_dim = 2, 32, 256

    k_params, k_params2, k_bs, k_delta = jax.random.split(key, 4)
    bs_w = jax.random.normal(k_bs, (batch, w_dim), jnp.float32)
    delta_w = jax.random.normal(k_delta, (batch, w_dim), jnp.float32)

    # Default config: hidden_dims=[] -> attitude path is a single Linear.
    params = make_params(k_params, w_dim, volume_dim, hidden_dims=[])
    out = jax.block_until_ready(regression_volume2_forward(bs_w, delta_w, params))
    ref = reference_forward(bs_w, delta_w, params)
    assert out.shape == (batch, volume_dim)
    assert jnp.allclose(out, ref, rtol=1e-5, atol=1e-5)

    # hidden_dims=[64] config: exercises the Linear+LeakyReLU hidden kernel
    # and the leaky-final fused path.
    params_h = make_params(k_params2, w_dim, volume_dim, hidden_dims=[64])
    out_h = jax.block_until_ready(
        regression_volume2_forward(bs_w, delta_w, params_h))
    ref_h = reference_forward(bs_w, delta_w, params_h)
    assert out_h.shape == (batch, volume_dim)
    assert jnp.allclose(out_h, ref_h, rtol=1e-5, atol=1e-5)

    print("KERNEL_OK")
</pallas_src>

<mosaic_0001>
module attributes {stable_mosaic.version = 11 : i64} {
  func.func @_fused_final_kernel(%arg0: i32, %arg1: memref<2x32xf32, #tpu.memory_space<vmem>>, %arg2: memref<32x256xf32, #tpu.memory_space<vmem>>, %arg3: memref<1x256xf32, #tpu.memory_space<vmem>>, %arg4: memref<2x32xf32, #tpu.memory_space<vmem>>, %arg5: memref<32x256xf32, #tpu.memory_space<vmem>>, %arg6: memref<1x256xf32, #tpu.memory_space<vmem>>, %arg7: memref<2x256xf32, #tpu.memory_space<vmem>>) attributes {dimension_semantics = [#tpu.dimension_semantics<parallel>], iteration_bounds = array<i64: 1>, scalar_prefetch = 0 : i64, scratch_operands = 0 : i64, tpu.core_type = #tpu.core_type<tc>, window_params = [{pipeline_mode = #tpu.pipeline_mode<synchronous>, transform_indices = @transform_0, window_bounds = array<i64: 2, 32>}, {transform_indices = @transform_1, window_bounds = array<i64: 32, 256>}, {transform_indices = @transform_2, window_bounds = array<i64: 1, 256>}, {pipeline_mode = #tpu.pipeline_mode<synchronous>, transform_indices = @transform_3, window_bounds = array<i64: 2, 32>}, {transform_indices = @transform_4, window_bounds = array<i64: 32, 256>}, {transform_indices = @transform_5, window_bounds = array<i64: 1, 256>}, {transform_indices = @transform_6, window_bounds = array<i64: 2, 256>}]} {
    %c0 = arith.constant 0 : index
    %c0_0 = arith.constant 0 : index
    %0 = vector.load %arg1[%c0, %c0_0] : memref<2x32xf32, #tpu.memory_space<vmem>>, vector<2x32xf32>
    %c0_1 = arith.constant 0 : index
    %c0_2 = arith.constant 0 : index
    %1 = vector.load %arg2[%c0_1, %c0_2] : memref<32x256xf32, #tpu.memory_space<vmem>>, vector<32x256xf32>
    %cst = arith.constant dense<0.000000e+00> : vector<2x256xf32>
    %2 = tpu.matmul %0, %1, %cst {dimension_numbers = #tpu.dot_dimension_numbers<[1], [0], [0], [1], [0, 0, 1, 1], [], []>} : vector<2x32xf32>, vector<32x256xf32>, vector<2x256xf32> -> vector<2x256xf32>
    %c0_3 = arith.constant 0 : index
    %c0_4 = arith.constant 0 : index
    %3 = vector.load %arg3[%c0_3, %c0_4] : memref<1x256xf32, #tpu.memory_space<vmem>>, vector<1x256xf32>
    %4 = vector.broadcast %3 : vector<1x256xf32> to vector<2x256xf32>
    %5 = arith.addf %2, %4 : vector<2x256xf32>
    %c0_5 = arith.constant 0 : index
    %c0_6 = arith.constant 0 : index
    %6 = vector.load %arg4[%c0_5, %c0_6] : memref<2x32xf32, #tpu.memory_space<vmem>>, vector<2x32xf32>
    %c0_7 = arith.constant 0 : index
    %c0_8 = arith.constant 0 : index
    %7 = vector.load %arg5[%c0_7, %c0_8] : memref<32x256xf32, #tpu.memory_space<vmem>>, vector<32x256xf32>
    %cst_9 = arith.constant dense<0.000000e+00> : vector<2x256xf32>
    %8 = tpu.matmul %6, %7, %cst_9 {dimension_numbers = #tpu.dot_dimension_numbers<[1], [0], [0], [1], [0, 0, 1, 1], [], []>} : vector<2x32xf32>, vector<32x256xf32>, vector<2x256xf32> -> vector<2x256xf32>
    %c0_10 = arith.constant 0 : index
    %c0_11 = arith.constant 0 : index
    %9 = vector.load %arg6[%c0_10, %c0_11] : memref<1x256xf32, #tpu.memory_space<vmem>>, vector<1x256xf32>
    %10 = vector.broadcast %9 : vector<1x256xf32> to vector<2x256xf32>
    %11 = arith.addf %8, %10 : vector<2x256xf32>
    %12 = arith.mulf %5, %11 : vector<2x256xf32>
    %c0_12 = arith.constant 0 : index
    %c0_13 = arith.constant 0 : index
    %13 = vector.load %arg7[%c0_12, %c0_13] : memref<2x256xf32, #tpu.memory_space<vmem>>, vector<2x256xf32>
    tpu.vector_store %arg7[%c0_12, %c0_13], %12 {strides = array<i32>} : memref<2x256xf32, #tpu.memory_space<vmem>>, vector<2x256xf32>,
    return
  }
  func.func @transform_0(%arg0: i32) -> (i32, i32) {
    %c0_i32 = arith.constant 0 : i32
    %c0_i32_0 = arith.constant 0 : i32
    %c0_i32_1 = arith.constant 0 : i32
    return %c0_i32, %c0_i32_0 : i32, i32
  }
  func.func @transform_1(%arg0: i32) -> (i32, i32) {
    %c0_i32 = arith.constant 0 : i32
    %c0_i32_0 = arith.constant 0 : i32
    return %c0_i32, %arg0 : i32, i32
  }
  func.func @transform_2(%arg0: i32) -> (i32, i32) {
    %c0_i32 = arith.constant 0 : i32
    %c0_i32_0 = arith.constant 0 : i32
    return %c0_i32, %arg0 : i32, i32
  }
  func.func @transform_3(%arg0: i32) -> (i32, i32) {
    %c0_i32 = arith.constant 0 : i32
    %c0_i32_0 = arith.constant 0 : i32
    %c0_i32_1 = arith.constant 0 : i32
    return %c0_i32, %c0_i32_0 : i32, i32
  }
  func.func @transform_4(%arg0: i32) -> (i32, i32) {
    %c0_i32 = arith.constant 0 : i32
    %c0_i32_0 = arith.constant 0 : i32
    return %c0_i32, %arg0 : i32, i32
  }
  func.func @transform_5(%arg0: i32) -> (i32, i32) {
    %c0_i32 = arith.constant 0 : i32
    %c0_i32_0 = arith.constant 0 : i32
    return %c0_i32, %arg0 : i32, i32
  }
  func.func @transform_6(%arg0: i32) -> (i32, i32) {
    %c0_i32 = arith.constant 0 : i32
    %c0_i32_0 = arith.constant 0 : i32
    return %c0_i32, %arg0 : i32, i32
  }
}

</mosaic_0001>

<llo_original>
// kernel: tpu_custom_call.1
$region0: #{tpu_custom_call.1}
  #allocation0 [shape = 'u32[]', space=smem, size = 0x4, offset = 0x4, fixed_abs, tag = 'smem constant byte address 0x4 - core index']
  #allocation1 [shape = 'u32[144,128]{1,0:T(1,128)}', space=vmem, size = 0x12000, scoped, tag = 'internal scratch']
  %s0 = inlined_call_operand.hbm [shape: f32[2,32], index: 0, kind: input, shape index: {}]
  %s1 = inlined_call_operand.hbm [shape: f32[32,256], index: 1, kind: input, shape index: {}]
  %s2 = inlined_call_operand.vmem [shape: f32[1,256], index: 2, kind: input, shape index: {}]
  %s3 = inlined_call_operand.vmem [shape: f32[2,32], index: 3, kind: input, shape index: {}]
  %s4 = inlined_call_operand.hbm [shape: f32[32,256], index: 4, kind: input, shape index: {}]
  %s5 = inlined_call_operand.vmem [shape: f32[1,256], index: 5, kind: input, shape index: {}]
  %s6 = inlined_call_operand.hbm [shape: f32[2,256], index: 6, kind: output, shape index: {}]
  %s7 = sld [smem:[#allocation0]]
  $region46: #{tpu_custom_call.1} parent=0
    _
  %s9 = ssub.s32 1, %s7
  %s10 = scalar_select 0, %s9, %s7
  $region1: #{tpu_custom_call.1} parent=0
    #allocation2 [shape = 'u8[1024]{0}', space=vmem, size = 0x400, scoped, tag = 'input window, operand 0, single buffered']
    #allocation3 [shape = 's32[1]{0}', space=sflag, size = 0x4, scoped, tag = 'scoped memory for tpu_custom_call.1']
    #allocation4 [shape = 's32[1]{0}', space=sflag, size = 0x4, scoped, tag = 'scoped memory for tpu_custom_call.1']
    #allocation5 [shape = 'u8[32768]{0}', space=vmem, size = 0x8000, scoped, tag = 'input window, operand 1, single buffered']
    #allocation6 [shape = 's32[1]{0}', space=sflag, size = 0x4, scoped, tag = 'scoped memory for tpu_custom_call.1']
    #allocation7 [shape = 'u8[32768]{0}', space=vmem, size = 0x8000, scoped, tag = 'input window, operand 4, single buffered']
    #allocation8 [shape = 'u8[2048]{0}', space=vmem, size = 0x800, scoped, tag = 'output window, operand 0, single buffered']
    %11 = vsyncpa [#allocation3], 0
    %12 = vsyncpa [#allocation6], 0
    %13 = vsyncpa [#allocation4], 0
    // Predicated region
    $region2: #{tpu_custom_call.1} parent=1 // pred_check
      _
    $region3: #{tpu_custom_call.1} parent=1 // pred_check_branch
      %15 = sbr.rel (0) target = $region5
    $region4: #{tpu_custom_call.1} parent=1 // pred_region
      %s17 = ssub.s32 32, 32
      %18 = vsyncadd [#allocation3], %s17
      %s20 = sshll.u32 [#allocation2], 4
      %s21 = int_to_ptr.vmem [resolvable:$true] %s20
      %23 = dma.hbm_to_vmem [thread:$0]  %s0, 32, %s21, [#allocation3]
    $region5: #{tpu_custom_call.1} parent=1 // pred_fallthru
      _
    // Predicated region
    $region6: #{tpu_custom_call.1} parent=1 // pred_check
      _
    $region7: #{tpu_custom_call.1} parent=1 // pred_check_branch
      %25 = sbr.rel (0) target = $region9
    $region8: #{tpu_custom_call.1} parent=1 // pred_region
      %s27 = ssub.s32 1024, 1024
      %28 = vsyncadd [#allocation6], %s27
      %s29 = sshll.u32 [#allocation5], 4
      %s30 = int_to_ptr.vmem [resolvable:$true] %s29
      %35 = dma.hbm_to_vmem [thread:$0]  %s1, 1024, %s30, [#allocation6], 256, 256, 16
    $region9: #{tpu_custom_call.1} parent=1 // pred_fallthru
      _
    // Predicated region
    $region10: #{tpu_custom_call.1} parent=1 // pred_check
      _
    $region11: #{tpu_custom_call.1} parent=1 // pred_check_branch
      %37 = sbr.rel (0) target = $region13
    $region12: #{tpu_custom_call.1} parent=1 // pred_region
      _
    $region13: #{tpu_custom_call.1} parent=1 // pred_fallthru
      _
    // Predicated region
    $region14: #{tpu_custom_call.1} parent=1 // pred_check
      _
    $region15: #{tpu_custom_call.1} parent=1 // pred_check_branch
      %39 = sbr.rel (0) target = $region17
    $region16: #{tpu_custom_call.1} parent=1 // pred_region
      _
    $region17: #{tpu_custom_call.1} parent=1 // pred_fallthru
      _
    // Predicated region
    $region18: #{tpu_custom_call.1} parent=1 // pred_check
      _
    $region19: #{tpu_custom_call.1} parent=1 // pred_check_branch
      %41 = sbr.rel (0) target = $region21
    $region20: #{tpu_custom_call.1} parent=1 // pred_region
      %s43 = ssub.s32 1024, 1024
      %44 = vsyncadd [#allocation6], %s43
      %s45 = sshll.u32 [#allocation7], 4
      %s46 = int_to_ptr.vmem [resolvable:$true] %s45
      %51 = dma.hbm_to_vmem [thread:$0]  %s4, 1024, %s46, [#allocation6], 256, 256, 16
    $region21: #{tpu_custom_call.1} parent=1 // pred_fallthru
      _
    // Predicated region
    $region22: #{tpu_custom_call.1} parent=1 // pred_check
      _
    $region23: #{tpu_custom_call.1} parent=1 // pred_check_branch
      %53 = sbr.rel (0) target = $region25
    $region24: #{tpu_custom_call.1} parent=1 // pred_region
      _
    $region25: #{tpu_custom_call.1} parent=1 // pred_fallthru
      _
    // Predicated region
    $region26: #{tpu_custom_call.1} parent=1 // pred_check
      _
    $region27: #{tpu_custom_call.1} parent=1 // pred_check_branch
      %55 = sbr.rel (0) target = $region29
    $region28: #{tpu_custom_call.1} parent=1 // pred_region
      %56 = dma.done [#allocation3], 32
    $region29: #{tpu_custom_call.1} parent=1 // pred_fallthru
      _
    // Predicated region
    $region30: #{tpu_custom_call.1} parent=1 // pred_check
      _
    $region31: #{tpu_custom_call.1} parent=1 // pred_check_branch
      %58 = sbr.rel (0) target = $region33
    $region32: #{tpu_custom_call.1} parent=1 // pred_region
      %59 = dma.done [#allocation6], 1024
    $region33: #{tpu_custom_call.1} parent=1 // pred_fallthru
      _
    // Predicated region
    $region34: #{tpu_custom_call.1} parent=1 // pred_check
      _
    $region35: #{tpu_custom_call.1} parent=1 // pred_check_branch
      %61 = sbr.rel (0) target = $region37
    $region36: #{tpu_custom_call.1} parent=1 // pred_region
      %62 = dma.done [#allocation6], 1024
    $region37: #{tpu_custom_call.1} parent=1 // pred_fallthru
      _
    %v63 = vld [vmem:[#allocation2] sm:$0x3]
    %v64 = vld [vmem:[#allocation5] sm:$0xff]
    %v65 = vld [vmem:[#allocation5 + $0x8] sm:$0xff]
    %v66 = vld [vmem:[#allocation5 + $0x10] sm:$0xff]
    %v67 = vld [vmem:[#allocation5 + $0x18] sm:$0xff]
    %v68 = vld [vmem:[#allocation5 + $0x20] sm:$0xff]
    %v69 = vld [vmem:[#allocation5 + $0x28] sm:$0xff]
    %v70 = vld [vmem:[#allocation5 + $0x30] sm:$0xff]
    %v71 = vld [vmem:[#allocation5 + $0x38] sm:$0xff]
    %v72 = vld [vmem:[%s2] sm:$0x3]
    %v74 = vlaneseq
    %v75 = vshrl.u32 %v74, 7
    %v76 = vsub.s32 0, %v75
    %v77 = vrot.slane %v72, %v76
    %v78 = vlaneseq
    %v79 = vshrl.u32 %v78, 7
    %v80 = vsub.s32 1, %v79
    %v81 = vrot.slane %v72, %v80
    %vm84 = vcmask 261120
    %v86 = vsel %vm84, %v63, 0
    %88 = vmatprep.subr.mxu0 %v65
    %89 = vmatpush1.msra.mxu0 %v64
    %90 = vmatprep.subr.mxu0 %v67
    %91 = vmatpush1.msra.mxu0 %v66
    %92 = vmatprep.subr.mxu0 %v69
    %93 = vmatpush1.msra.mxu0 %v68
    %94 = vmatprep.subr.mxu0 %v71
    %95 = vmatpush1.msra.mxu0 %v70
    %96 = vmatprep.subr.mxu0 0.0
    %97 = vmatpush1.msra.mxu0 0.0
    %98 = vmatprep.subr.mxu0 0.0
    %99 = vmatpush1.msra.mxu0 0.0
    %100 = vmatprep.subr.mxu0 0.0
    %101 = vmatpush1.msra.mxu0 0.0
    %102 = vmatprep.subr.mxu0 0.0
    %103 = vmatpush1.msra.mxu0 0.0
    %104 = vmatprep.subr.mxu0 0.0
    %105 = vmatpush1.msra.mxu0 0.0
    %106 = vmatprep.subr.mxu0 0.0
    %107 = vmatpush1.msra.mxu0 0.0
    %108 = vmatprep.subr.mxu0 0.0
    %109 = vmatpush1.msra.mxu0 0.0
    %110 = vmatprep.subr.mxu0 0.0
    %111 = vmatpush1.msra.mxu0 0.0
    %112 = vmatprep.subr.mxu0 0.0
    %113 = vmatpush1.msra.mxu0 0.0
    %114 = vmatprep.subr.mxu0 0.0
    %115 = vmatpush1.msra.mxu0 0.0
    %116 = vmatprep.subr.mxu0 0.0
    %117 = vmatpush1.msra.mxu0 0.0
    %118 = vmatprep.subr.mxu0 0.0
    %119 = vmatpush1.msra.mxu0 0.0
    %120 = vmatprep.subr.mxu0 0.0
    %121 = vmatpush1.msra.mxu0 0.0
    %122 = vmatprep.subr.mxu0 0.0
    %123 = vmatpush1.msra.mxu0 0.0
    %124 = vmatprep.subr.mxu0 0.0
    %125 = vmatpush1.msra.mxu0 0.0
    %126 = vmatprep.subr.mxu0 0.0
    %127 = vmatpush1.msra.mxu0 0.0
    %128 = vmatprep.subr.mxu0 0.0
    %129 = vmatpush1.msra.mxu0 0.0
    %130 = vmatprep.subr.mxu0 0.0
    %131 = vmatpush1.msra.mxu0 0.0
    %132 = vmatprep.subr.mxu0 0.0
    %133 = vmatpush1.msra.mxu0 0.0
    %134 = vmatprep.subr.mxu0 0.0
    %135 = vmatpush1.msra.mxu0 0.0
    %136 = vmatprep.subr.mxu0 0.0
    %137 = vmatpush1.msra.mxu0 0.0
    %138 = vmatprep.subr.mxu0 0.0
    %139 = vmatpush1.msra.mxu0 0.0
    %140 = vmatprep.subr.mxu0 0.0
    %141 = vmatpush1.msra.mxu0 0.0
    %142 = vmatprep.subr.mxu0 0.0
    %143 = vmatpush1.msra.mxu0 0.0
    %144 = vmatprep.subr.mxu0 0.0
    %145 = vmatpush1.msra.mxu0 0.0
    %146 = vmatprep.subr.mxu0 0.0
    %147 = vmatpush1.msra.mxu0 0.0
    %148 = vmatprep.subr.mxu0 0.0
    %149 = vmatpush1.msra.mxu0 0.0
    %150 = vmatprep.subr.mxu0 0.0
    %151 = vmatpush1.msra.mxu0 0.0
    %152 = vmatprep.mubr.f32.mxu0 0.0
    %153 = vmatmul.mubr.f32.gmra.mrb[0].mxu0 %v86
    %v154 = vpop.f32.mrb[0].mxu0
    %v155 = vadd.f32 %v77, %v154
    %v156 = vpop.f32.mrb[0].mxu0
    %v157 = vadd.f32 %v81, %v156
    %158 = vdwg.mxu0
    %v159 = vld [vmem:[%s3] sm:$0x3]
    %v160 = vld [vmem:[#allocation7] sm:$0xff]
    %v161 = vld [vmem:[#allocation7 + $0x8] sm:$0xff]
    %v162 = vld [vmem:[#allocation7 + $0x10] sm:$0xff]
    %v163 = vld [vmem:[#allocation7 + $0x18] sm:$0xff]
    %v164 = vld [vmem:[#allocation7 + $0x20] sm:$0xff]
    %v165 = vld [vmem:[#allocation7 + $0x28] sm:$0xff]
    %v166 = vld [vmem:[#allocation7 + $0x30] sm:$0xff]
    %v167 = vld [vmem:[#allocation7 + $0x38] sm:$0xff]
    %v168 = vld [vmem:[%s5] sm:$0x3]
    %v170 = vlaneseq
    %v171 = vshrl.u32 %v170, 7
    %v172 = vsub.s32 0, %v171
    %v173 = vrot.slane %v168, %v172
    %v174 = vlaneseq
    %v175 = vshrl.u32 %v174, 7
    %v176 = vsub.s32 1, %v175
    %v177 = vrot.slane %v168, %v176
    %v181 = vsel %vm84, %v159, 0
    %183 = vmatprep.subr.mxu0 %v161
    %184 = vmatpush1.msra.mxu0 %v160
    %185 = vmatprep.subr.mxu0 %v163
    %186 = vmatpush1.msra.mxu0 %v162
    %187 = vmatprep.subr.mxu0 %v165
    %188 = vmatpush1.msra.mxu0 %v164
    %189 = vmatprep.subr.mxu0 %v167
    %190 = vmatpush1.msra.mxu0 %v166
    %191 = vmatprep.subr.mxu0 0.0
    %192 = vmatpush1.msra.mxu0 0.0
    %193 = vmatprep.subr.mxu0 0.0
    %194 = vmatpush1.msra.mxu0 0.0
    %195 = vmatprep.subr.mxu0 0.0
    %196 = vmatpush1.msra.mxu0 0.0
    %197 = vmatprep.subr.mxu0 0.0
    %198 = vmatpush1.msra.mxu0 0.0
    %199 = vmatprep.subr.mxu0 0.0
    %200 = vmatpush1.msra.mxu0 0.0
    %201 = vmatprep.subr.mxu0 0.0
    %202 = vmatpush1.msra.mxu0 0.0
    %203 = vmatprep.subr.mxu0 0.0
    %204 = vmatpush1.msra.mxu0 0.0
    %205 = vmatprep.subr.mxu0 0.0
    %206 = vmatpush1.msra.mxu0 0.0
    %207 = vmatprep.subr.mxu0 0.0
    %208 = vmatpush1.msra.mxu0 0.0
    %209 = vmatprep.subr.mxu0 0.0
    %210 = vmatpush1.msra.mxu0 0.0
    %211 = vmatprep.subr.mxu0 0.0
    %212 = vmatpush1.msra.mxu0 0.0
    %213 = vmatprep.subr.mxu0 0.0
    %214 = vmatpush1.msra.mxu0 0.0
    %215 = vmatprep.subr.mxu0 0.0
    %216 = vmatpush1.msra.mxu0 0.0
    %217 = vmatprep.subr.mxu0 0.0
    %218 = vmatpush1.msra.mxu0 0.0
    %219 = vmatprep.subr.mxu0 0.0
    %220 = vmatpush1.msra.mxu0 0.0
    %221 = vmatprep.subr.mxu0 0.0
    %222 = vmatpush1.msra.mxu0 0.0
    %223 = vmatprep.subr.mxu0 0.0
    %224 = vmatpush1.msra.mxu0 0.0
    %225 = vmatprep.subr.mxu0 0.0
    %226 = vmatpush1.msra.mxu0 0.0
    %227 = vmatprep.subr.mxu0 0.0
    %228 = vmatpush1.msra.mxu0 0.0
    %229 = vmatprep.subr.mxu0 0.0
    %230 = vmatpush1.msra.mxu0 0.0
    %231 = vmatprep.subr.mxu0 0.0
    %232 = vmatpush1.msra.mxu0 0.0
    %233 = vmatprep.subr.mxu0 0.0
    %234 = vmatpush1.msra.mxu0 0.0
    %235 = vmatprep.subr.mxu0 0.0
    %236 = vmatpush1.msra.mxu0 0.0
    %237 = vmatprep.subr.mxu0 0.0
    %238 = vmatpush1.msra.mxu0 0.0
    %239 = vmatprep.subr.mxu0 0.0
    %240 = vmatpush1.msra.mxu0 0.0
    %241 = vmatprep.subr.mxu0 0.0
    %242 = vmatpush1.msra.mxu0 0.0
    %243 = vmatprep.subr.mxu0 0.0
    %244 = vmatpush1.msra.mxu0 0.0
    %245 = vmatprep.subr.mxu0 0.0
    %246 = vmatpush1.msra.mxu0 0.0
    %247 = vmatprep.mubr.f32.mxu0 0.0
    %248 = vmatmul.mubr.f32.gmra.mrb[0].mxu0 %v181
    %v249 = vpop.f32.mrb[0].mxu0
    %v250 = vadd.f32 %v173, %v249
    %v251 = vpop.f32.mrb[0].mxu0
    %v252 = vadd.f32 %v177, %v251
    %253 = vdwg.mxu0
    %v254 = vmul.f32 %v155, %v250
    %v255 = vmul.f32 %v157, %v252
    %v258 = vcombine.low %v254, %v255
    %v260 = vunpack.c.l.s4 1983009808
    %v261 = vunpack.c.0.s8 %v260
    %v262 = vlaneseq
    %v263 = vshrl.u32 %v262, 7
    %v264 = vsub.s32 %v261, %v263
    %v265 = vrot.slane %v258, %v264
    %267 = vst [vmem:[#allocation8] sm:$0xf] %v265
    // Predicated region
    $region38: #{tpu_custom_call.1} parent=1 // pred_check
      _
    $region39: #{tpu_custom_call.1} parent=1 // pred_check_branch
      %269 = sbr.rel (0) target = $region41
    $region40: #{tpu_custom_call.1} parent=1 // pred_region
      %s271 = ssub.s32 64, 64
      %272 = vsyncadd [#allocation4], %s271
      %s274 = sshll.u32 [#allocation8], 4
      %s275 = int_to_ptr.vmem [resolvable:$true] %s274
      %277 = dma.vmem_to_hbm [thread:$0]  %s275, 64, %s6, [#allocation4]
    $region41: #{tpu_custom_call.1} parent=1 // pred_fallthru
      _
    // Predicated region
    $region42: #{tpu_custom_call.1} parent=1 // pred_check
      _
    $region43: #{tpu_custom_call.1} parent=1 // pred_check_branch
      %279 = sbr.rel (0) target = $region45
    $region44: #{tpu_custom_call.1} parent=1 // pred_region
      %280 = dma.done [#allocation4], 64
    $region45: #{tpu_custom_call.1} parent=1 // pred_fallthru
      _
    %281 = vsyncpa [#allocation3], 1
    %282 = vsyncpa [#allocation6], 1
    %283 = vsyncpa [#allocation4], 1

</llo_original>
